<compile_context>
chip_gen: v6e
topology: v6e:2x2x1
jax: 0.10.0
libtpu: 0.0.40
codegen_flags: <defaults>
</compile_context>

<pallas_src>
import jax
import jax.numpy as jnp
from jax import lax
from jax.experimental import pallas as pl
from jax.experimental.pallas import tpu as pltpu


def _yolo_kernel(x_ref,     # VMEM (BT, A, C5, GG) f32
                 mul_ref,   # VMEM (A, C5, GG) f32   per-channel/anchor scale
                 add_ref,   # VMEM (A, C5, GG) f32   per-channel/spatial offset
                 o_ref):    # VMEM (BT, A, C5, GG) f32
    p = x_ref[...]                                   # full block
    sig = jax.nn.sigmoid(p)                          # EUP, whole block
    e = jnp.exp(p)                                   # EUP, whole block
    C5, GG = p.shape[-2], p.shape[-1]
    c = lax.broadcasted_iota(jnp.int32, (1, 1, C5, GG), 2)
    is_exp = jnp.logical_and(c >= 2, c < 4)          # w,h channels use exp
    base = jnp.where(is_exp, e, sig)                 # select, no concat/slices
    out = base * mul_ref[...][None] + add_ref[...][None]
    o_ref[...] = out.astype(o_ref.dtype)


def yolo_layer_forward(x, anchors, num_classes, img_dim=416):
    """x: (B, A*(C+5), G, G) NCHW float32 -> (B, A*G*G, C+5) float32."""
    B, ch, G, G2 = x.shape
    assert G == G2
    A = anchors.shape[0]
    C5 = num_classes + 5
    assert ch == A * C5
    GG = G * G
    stride = float(img_dim) / float(G)

    x_blk = x.reshape(B, A, C5, GG).astype(jnp.float32)

    # ---- grid-invariant parameter tables (computed once in JAX) -------------
    # lane s = j*G + i  ->  grid_x = i, grid_y = j ; folded *stride in.
    s = jnp.arange(GG, dtype=jnp.int32)
    gx = (s % G).astype(jnp.float32) * stride                       # (GG,)
    gy = (s // G).astype(jnp.float32) * stride                      # (GG,)
    c_idx = jnp.arange(C5, dtype=jnp.int32)[None, :, None]          # (1,C5,1)
    aw = anchors[:, 0].astype(jnp.float32)[:, None, None]           # (A,1,1)
    ah = anchors[:, 1].astype(jnp.float32)[:, None, None]           # (A,1,1)
    # mul: c in {0,1} -> stride ; c==2 -> anchor_w (pixels, /stride*stride
    # cancels) ; c==3 -> anchor_h ; c>=4 -> 1
    mul = jnp.where(c_idx < 2, jnp.float32(stride),
          jnp.where(c_idx == 2, aw,
          jnp.where(c_idx == 3, ah, jnp.float32(1.0))))
    mul = jnp.broadcast_to(mul, (A, C5, GG)).astype(jnp.float32)
    # add: c==0 -> grid_x*stride ; c==1 -> grid_y*stride ; else 0
    add = jnp.where(c_idx == 0, gx[None, None, :],
          jnp.where(c_idx == 1, gy[None, None, :], jnp.float32(0.0)))
    add = jnp.broadcast_to(add, (A, C5, GG)).astype(jnp.float32)

    # ---- batch tile: big lane-dense blocks, bounded for v7x VMEM ------------
    bytes_per_batch = A * C5 * GG * 4
    budget = 2 * 1024 * 1024                       # ~2 MiB per block (safe on all gens)
    bt = max(1, min(B, budget // max(1, bytes_per_batch)))
    if B >= 2:
        bt = min(bt, pl.cdiv(B, 2))                # keep >=2 steps for megacore
    while B % bt != 0:                             # bt must tile B exactly
        bt -= 1

    out_blk = pl.pallas_call(
        _yolo_kernel,
        out_shape=jax.ShapeDtypeStruct((B, A, C5, GG), jnp.float32),
        grid_spec=pltpu.PrefetchScalarGridSpec(
            num_scalar_prefetch=0,
            grid=(B // bt,),
            in_specs=[
                pl.BlockSpec((bt, A, C5, GG), lambda b: (b, 0, 0, 0)),
                pl.BlockSpec((A, C5, GG), lambda b: (0, 0, 0)),   # resident
                pl.BlockSpec((A, C5, GG), lambda b: (0, 0, 0)),   # resident
            ],
            out_specs=pl.BlockSpec((bt, A, C5, GG), lambda b: (b, 0, 0, 0)),
        ),
        compiler_params=pltpu.CompilerParams(
            dimension_semantics=("parallel",)),
    )(x_blk, mul, add)

    # glue: (B, A, C5, GG) -> (B, A, GG, C5) -> (B, A*GG, C5)   (PyTorch layout;
    # under jit this fuses into the consumer rather than a standalone pass)
    return out_blk.transpose(0, 1, 3, 2).reshape(B, A * GG, C5)


def yolo_layer_reference(x, anchors, num_classes, img_dim=416):
    """Pure-JAX re-implementation of the PyTorch forward (for verification)."""
    B, _, G, _ = x.shape
    A = anchors.shape[0]
    stride = float(img_dim) / float(G)
    pred = x.reshape(B, A, num_classes + 5, G, G).transpose(0, 1, 3, 4, 2)
    sig = jax.nn.sigmoid
    gx = jnp.arange(G, dtype=jnp.float32).reshape(1, 1, 1, G)
    gy = jnp.arange(G, dtype=jnp.float32).reshape(1, 1, G, 1)
    aw = (anchors[:, 0] / stride).reshape(1, A, 1, 1)
    ah = (anchors[:, 1] / stride).reshape(1, A, 1, 1)
    bx = (sig(pred[..., 0]) + gx) * stride
    by = (sig(pred[..., 1]) + gy) * stride
    bw = jnp.exp(pred[..., 2]) * aw * stride
    bh = jnp.exp(pred[..., 3]) * ah * stride
    obj = sig(pred[..., 4])
    cls = sig(pred[..., 5:])
    boxes = jnp.stack([bx, by, bw, bh], axis=-1)
    return jnp.concatenate(
        [boxes.reshape(B, -1, 4), obj.reshape(B, -1, 1),
         cls.reshape(B, -1, num_classes)], axis=-1)


if __name__ == "__main__":
    # Small deterministic setup consistent with the module:
    #   A = 3 anchors, C = 4 classes -> channels = A*(C+5) = 27, G = 16, B = 2
    B, A, num_classes, G, img_dim = 2, 3, 4, 16, 416
    C5 = num_classes + 5

    key = jax.random.PRNGKey(0)
    x = jax.random.normal(key, (B, A * C5, G, G), dtype=jnp.float32)
    anchors = jnp.array([[10.0, 13.0], [16.0, 30.0], [33.0, 23.0]],
                        dtype=jnp.float32)

    out = yolo_layer_forward(x, anchors, num_classes, img_dim)
    out = jax.block_until_ready(out)

    ref = yolo_layer_reference(x, anchors, num_classes, img_dim)
    assert out.shape == (B, A * G * G, C5), out.shape
    assert jnp.allclose(out, ref, atol=1e-4, rtol=1e-4), \
        float(jnp.max(jnp.abs(out - ref)))

    print("KERNEL_OK")
</pallas_src>

<mosaic_0001>
module attributes {stable_mosaic.version = 11 : i64} {
  func.func @_yolo_kernel(%arg0: i32, %arg1: memref<1x3x9x256xf32, #tpu.memory_space<vmem>>, %arg2: memref<3x9x256xf32, #tpu.memory_space<vmem>>, %arg3: memref<3x9x256xf32, #tpu.memory_space<vmem>>, %arg4: memref<1x3x9x256xf32, #tpu.memory_space<vmem>>) attributes {dimension_semantics = [#tpu.dimension_semantics<parallel>], iteration_bounds = array<i64: 2>, scalar_prefetch = 0 : i64, scratch_operands = 0 : i64, tpu.core_type = #tpu.core_type<tc>, window_params = [{transform_indices = @transform_0, window_bounds = array<i64: 1, 3, 9, 256>}, {pipeline_mode = #tpu.pipeline_mode<synchronous>, transform_indices = @transform_1, window_bounds = array<i64: 3, 9, 256>}, {pipeline_mode = #tpu.pipeline_mode<synchronous>, transform_indices = @transform_2, window_bounds = array<i64: 3, 9, 256>}, {transform_indices = @transform_3, window_bounds = array<i64: 1, 3, 9, 256>}]} {
    %c0 = arith.constant 0 : index
    %c0_0 = arith.constant 0 : index
    %c0_1 = arith.constant 0 : index
    %c0_2 = arith.constant 0 : index
    %0 = vector.load %arg1[%c0, %c0_0, %c0_1, %c0_2] : memref<1x3x9x256xf32, #tpu.memory_space<vmem>>, vector<1x3x9x256xf32>
    %1 = arith.negf %0 : vector<1x3x9x256xf32>
    %2 = math.exp %1 : vector<1x3x9x256xf32>
    %cst = arith.constant 1.000000e+00 : f32
    %3 = vector.broadcast %cst : f32 to vector<1x3x9x256xf32>
    %4 = arith.addf %3, %2 : vector<1x3x9x256xf32>
    %5 = arith.divf %3, %4 : vector<1x3x9x256xf32>
    %6 = math.exp %0 : vector<1x3x9x256xf32>
    %7 = tpu.iota {dimensions = array<i32: 2>} : vector<1x1x9x256xi32>
    %c2_i32 = arith.constant 2 : i32
    %8 = vector.broadcast %c2_i32 : i32 to vector<1x1x9x256xi32>
    %9 = arith.cmpi sge, %7, %8 : vector<1x1x9x256xi32>
    %c4_i32 = arith.constant 4 : i32
    %10 = vector.broadcast %c4_i32 : i32 to vector<1x1x9x256xi32>
    %11 = arith.cmpi slt, %7, %10 : vector<1x1x9x256xi32>
    %12 = arith.andi %9, %11 : vector<1x1x9x256xi1>
    %13 = vector.shape_cast %12 : vector<1x1x9x256xi1> to vector<1x1x9x256xi1>
    %14 = vector.broadcast %13 : vector<1x1x9x256xi1> to vector<1x3x9x256xi1>
    %15 = arith.select %14, %6, %5 : vector<1x3x9x256xi1>, vector<1x3x9x256xf32>
    %c0_3 = arith.constant 0 : index
    %c0_4 = arith.constant 0 : index
    %c0_5 = arith.constant 0 : index
    %16 = vector.load %arg2[%c0_3, %c0_4, %c0_5] : memref<3x9x256xf32, #tpu.memory_space<vmem>>, vector<3x9x256xf32>
    %17 = vector.shape_cast %16 : vector<3x9x256xf32> to vector<1x3x9x256xf32>
    %18 = arith.mulf %15, %17 : vector<1x3x9x256xf32>
    %c0_6 = arith.constant 0 : index
    %c0_7 = arith.constant 0 : index
    %c0_8 = arith.constant 0 : index
    %19 = vector.load %arg3[%c0_6, %c0_7, %c0_8] : memref<3x9x256xf32, #tpu.memory_space<vmem>>, vector<3x9x256xf32>
    %20 = vector.shape_cast %19 : vector<3x9x256xf32> to vector<1x3x9x256xf32>
    %21 = arith.addf %18, %20 : vector<1x3x9x256xf32>
    %c0_9 = arith.constant 0 : index
    %c0_10 = arith.constant 0 : index
    %c0_11 = arith.constant 0 : index
    %c0_12 = arith.constant 0 : index
    %22 = vector.load %arg4[%c0_9, %c0_10, %c0_11, %c0_12] : memref<1x3x9x256xf32, #tpu.memory_space<vmem>>, vector<1x3x9x256xf32>
    tpu.vector_store %arg4[%c0_9, %c0_10, %c0_11, %c0_12], %21 {strides = array<i32>} : memref<1x3x9x256xf32, #tpu.memory_space<vmem>>, vector<1x3x9x256xf32>,
    return
  }
  func.func @transform_0(%arg0: i32) -> (i32, i32, i32, i32) {
    %c0_i32 = arith.constant 0 : i32
    %c0_i32_0 = arith.constant 0 : i32
    %c0_i32_1 = arith.constant 0 : i32
    %c0_i32_2 = arith.constant 0 : i32
    return %arg0, %c0_i32, %c0_i32_0, %c0_i32_1 : i32, i32, i32, i32
  }
  func.func @transform_1(%arg0: i32) -> (i32, i32, i32) {
    %c0_i32 = arith.constant 0 : i32
    %c0_i32_0 = arith.constant 0 : i32
    %c0_i32_1 = arith.constant 0 : i32
    %c0_i32_2 = arith.constant 0 : i32
    return %c0_i32, %c0_i32_0, %c0_i32_1 : i32, i32, i32
  }
  func.func @transform_2(%arg0: i32) -> (i32, i32, i32) {
    %c0_i32 = arith.constant 0 : i32
    %c0_i32_0 = arith.constant 0 : i32
    %c0_i32_1 = arith.constant 0 : i32
    %c0_i32_2 = arith.constant 0 : i32
    return %c0_i32, %c0_i32_0, %c0_i32_1 : i32, i32, i32
  }
  func.func @transform_3(%arg0: i32) -> (i32, i32, i32, i32) {
    %c0_i32 = arith.constant 0 : i32
    %c0_i32_0 = arith.constant 0 : i32
    %c0_i32_1 = arith.constant 0 : i32
    %c0_i32_2 = arith.constant 0 : i32
    return %arg0, %c0_i32, %c0_i32_0, %c0_i32_1 : i32, i32, i32, i32
  }
}

</mosaic_0001>

<llo_original>
// kernel: tpu_custom_call.1
$region0: #{tpu_custom_call.1}
  #allocation0 [shape = 'u32[]', space=smem, size = 0x4, offset = 0x4, fixed_abs, tag = 'smem constant byte address 0x4 - core index']
  #allocation1 [shape = 'u32[144,128]{1,0:T(1,128)}', space=vmem, size = 0x12000, scoped, tag = 'internal scratch']
  %s0 = inlined_call_operand.vmem [shape: f32[2,3,9,256], index: 0, kind: input, shape index: {}]
  %s1 = inlined_call_operand.vmem [shape: f32[3,9,256], index: 1, kind: input, shape index: {}]
  %s2 = inlined_call_operand.vmem [shape: f32[3,9,256], index: 2, kind: input, shape index: {}]
  %s3 = inlined_call_operand.vmem [shape: f32[2,3,9,256], index: 3, kind: output, shape index: {}]
  %s4 = sld [smem:[#allocation0]]
  $region45: #{tpu_custom_call.1} parent=0
    _
  %s6 = ssub.s32 1, %s4
  %s7 = scalar_select 0, %s6, %s4
  loop: start=0, step=1, limit=4
  $region2: #{tpu_custom_call.1} parent=0 // loop_pre_header
    _
  $region3: #{tpu_custom_call.1} parent=0 // loop_header
    %s9 = sphi 0, %s13
    %p10 = scmp.ge.s32.totalorder %s9, 4
    %s19 = sphi 0, %s21
    %s22 = sphi 0, %s19
    %s23 = sphi 0, %s22
    %s39 = sphi 0, %s23
    %s43 = sphi 0, %s43
    %s45 = sphi 0, %s43
    %s46 = sphi 0, %s45
    %s60 = sphi 0, %s46
    %s64 = sphi 0, %s64
    %s66 = sphi 0, %s64
    %s67 = sphi 0, %s66
    %s81 = sphi 0, %s67
    %s87 = sphi 0, %s89
    %s90 = sphi 0, %s87
    %s91 = sphi 0, %s90
    %s107 = sphi 0, %s91
  $region4: #{tpu_custom_call.1} parent=0 // loop_header_branch
    %12 = sbr.rel (%p10) target = $region8
  $region5: #{tpu_custom_call.1} parent=0 // loop_body
    %s14 = ssub.s32 %s9, 1
    %s15 = ssub.s32 %s9, 2
    %s16 = sadd.s32 %s9, 1
    %s17 = ssub.s32 %s9, %s16
    %p18 = scmp.eq.s32.totalorder %s17, 0
    %s20 = sadd.s32 %s19, 1
    %s21 = scalar_select %p18, %s19, %s20
    %p24 = pneg %p18
    %p25 = scmp.eq.s32.totalorder %s9, 1
    %p26 = por %p24, %p25
    %p27 = scmp.ne.s32.totalorder %s19, %s22
    %p28 = scmp.eq.s32.totalorder %s9, 0
    %p29 = por %p27, %p28
    %p30 = scmp.ne.s32.totalorder %s19, %s22
    %p31 = scmp.eq.s32.totalorder %s14, 1
    %p32 = por %p30, %p31
    %p33 = scmp.ne.s32.totalorder %s22, %s23
    %p34 = scmp.eq.s32.totalorder %s14, 0
    %p35 = por %p33, %p34
    %p36 = scmp.ne.s32.totalorder %s22, %s23
    %p37 = scmp.eq.s32.totalorder %s15, 1
    %p38 = por %p36, %p37
    %p40 = scmp.ne.s32.totalorder %s23, %s39
    %p41 = scmp.eq.s32.totalorder %s15, 0
    %p42 = por %p40, %p41
    %s44 = sadd.s32 %s43, 1
    %p47 = scmp.eq.s32.totalorder %s9, 1
    %p48 = scmp.ne.s32.totalorder %s43, %s45
    %p49 = scmp.eq.s32.totalorder %s9, 0
    %p50 = por %p48, %p49
    %p51 = scmp.ne.s32.totalorder %s43, %s45
    %p52 = scmp.eq.s32.totalorder %s14, 1
    %p53 = por %p51, %p52
    %p54 = scmp.ne.s32.totalorder %s45, %s46
    %p55 = scmp.eq.s32.totalorder %s14, 0
    %p56 = por %p54, %p55
    %p57 = scmp.ne.s32.totalorder %s45, %s46
    %p58 = scmp.eq.s32.totalorder %s15, 1
    %p59 = por %p57, %p58
    %p61 = scmp.ne.s32.totalorder %s46, %s60
    %p62 = scmp.eq.s32.totalorder %s15, 0
    %p63 = por %p61, %p62
    %s65 = sadd.s32 %s64, 1
    %p68 = scmp.eq.s32.totalorder %s9, 1
    %p69 = scmp.ne.s32.totalorder %s64, %s66
    %p70 = scmp.eq.s32.totalorder %s9, 0
    %p71 = por %p69, %p70
    %p72 = scmp.ne.s32.totalorder %s64, %s66
    %p73 = scmp.eq.s32.totalorder %s14, 1
    %p74 = por %p72, %p73
    %p75 = scmp.ne.s32.totalorder %s66, %s67
    %p76 = scmp.eq.s32.totalorder %s14, 0
    %p77 = por %p75, %p76
    %p78 = scmp.ne.s32.totalorder %s66, %s67
    %p79 = scmp.eq.s32.totalorder %s15, 1
    %p80 = por %p78, %p79
    %p82 = scmp.ne.s32.totalorder %s67, %s81
    %p83 = scmp.eq.s32.totalorder %s15, 0
    %p84 = por %p82, %p83
    %s85 = ssub.s32 %s9, %s16
    %p86 = scmp.eq.s32.totalorder %s85, 0
    %s88 = sadd.s32 %s87, 1
    %s89 = scalar_select %p86, %s87, %s88
    %p92 = pneg %p86
    %p93 = scmp.eq.s32.totalorder %s9, 1
    %p94 = por %p92, %p93
    %p95 = scmp.ne.s32.totalorder %s87, %s90
    %p96 = scmp.eq.s32.totalorder %s9, 0
    %p97 = por %p95, %p96
    %p98 = scmp.ne.s32.totalorder %s87, %s90
    %p99 = scmp.eq.s32.totalorder %s14, 1
    %p100 = por %p98, %p99
    %p101 = scmp.ne.s32.totalorder %s90, %s91
    %p102 = scmp.eq.s32.totalorder %s14, 0
    %p103 = por %p101, %p102
    %p104 = scmp.ne.s32.totalorder %s90, %s91
    %p105 = scmp.eq.s32.totalorder %s15, 1
    %p106 = por %p104, %p105
    %p108 = scmp.ne.s32.totalorder %s91, %s107
    %p109 = scmp.eq.s32.totalorder %s15, 0
    %p110 = por %p108, %p109
    %p111 = scmp.le.s32.totalorder 1, %s9
    %p112 = scmp.lt.s32.totalorder %s9, 3
    %p113 = pnand %p111, %p112
    %p114 = pneg %p113
    // Predicated region
    $region9: #{tpu_custom_call.1} parent=5 // pred_check
      _
    $region10: #{tpu_custom_call.1} parent=5 // pred_check_branch
      %116 = sbr.rel (%p113) target = $region12
    $region11: #{tpu_custom_call.1} parent=5 // pred_region
      %s117 = ssub.s32 %s9, 1
      // Predicated region
      $region13: #{tpu_custom_call.1} parent=11 // pred_check
        %p118 = pneg %p56
      $region14: #{tpu_custom_call.1} parent=11 // pred_check_branch
        %120 = sbr.rel (%p118) target = $region16
      $region15: #{tpu_custom_call.1} parent=11 // pred_region
        _
      $region16: #{tpu_custom_call.1} parent=11 // pred_fallthru
        _
      // Predicated region
      $region17: #{tpu_custom_call.1} parent=11 // pred_check
        %p121 = pneg %p77
      $region18: #{tpu_custom_call.1} parent=11 // pred_check_branch
        %123 = sbr.rel (%p121) target = $region20
      $region19: #{tpu_custom_call.1} parent=11 // pred_region
        _
      $region20: #{tpu_custom_call.1} parent=11 // pred_fallthru
        _
    $region12: #{tpu_custom_call.1} parent=5 // pred_fallthru
      _
    %p124 = scmp.lt.s32.totalorder %s9, 2
    // Predicated region
    $region21: #{tpu_custom_call.1} parent=5 // pred_check
      %p125 = pneg %p124
    $region22: #{tpu_custom_call.1} parent=5 // pred_check_branch
      %127 = sbr.rel (%p125) target = $region24
    $region23: #{tpu_custom_call.1} parent=5 // pred_region
      // Predicated region
      $region25: #{tpu_custom_call.1} parent=23 // pred_check
        %p128 = pneg %p29
      $region26: #{tpu_custom_call.1} parent=23 // pred_check_branch
        %130 = sbr.rel (%p128) target = $region28
      $region27: #{tpu_custom_call.1} parent=23 // pred_region
        %p131 = scmp.lt.s32.totalorder %s9, 1
        %s132 = scalar_select %p131, %s9, 1
        %s133 = smul.addr %s132, 12
        %s134 = smul.addr %s133, 8
        %s135 = scalar_lea.vmem %s0, %s134
      $region28: #{tpu_custom_call.1} parent=23 // pred_fallthru
        _
    $region24: #{tpu_custom_call.1} parent=5 // pred_fallthru
      _
    %p136 = scmp.le.s32.totalorder 1, %s9
    %p137 = scmp.lt.s32.totalorder %s9, 3
    %p138 = pnand %p136, %p137
    %p139 = pneg %p138
    // Predicated region
    $region29: #{tpu_custom_call.1} parent=5 // pred_check
      _
    $region30: #{tpu_custom_call.1} parent=5 // pred_check_branch
      %141 = sbr.rel (%p138) target = $region32
    $region31: #{tpu_custom_call.1} parent=5 // pred_region
      %s142 = ssub.s32 %s9, 1
      %p143 = scmp.lt.s32.totalorder %s14, 1
      %s144 = scalar_select %p143, %s14, 1
      %s145 = smul.addr %s144, 12
      %s146 = smul.addr %s145, 8
      %s147 = scalar_lea.vmem %s0, %s146
      %p148 = pneg %p35
      %p149 = pneg %p32
      %p150 = pneg %p56
      %p151 = pneg %p53
      %p152 = pneg %p77
      %p153 = pneg %p74
      %p154 = pneg %p103
      %p155 = pneg %p100
      %p156 = scmp.lt.s32.totalorder %s14, 1
      %s157 = scalar_select %p156, %s14, 1
      %s158 = smul.addr %s157, 12
      %s159 = smul.addr %s158, 8
      %s160 = scalar_lea.vmem %s3, %s159
      %p161 = scmp.lt.s32.totalorder %s14, 1
      %s162 = scalar_select %p161, %s14, 1
      %s163 = smul.addr %s162, 12
      %s164 = smul.addr %s163, 8
      %s165 = scalar_lea.vmem %s0, %s164
      %p166 = scmp.lt.s32.totalorder %s14, 1
      %s167 = scalar_select %p166, %s14, 1
      %s168 = smul.addr %s167, 12
      %s169 = smul.addr %s168, 8
      %s170 = scalar_lea.vmem %s3, %s169
      %v171 = vld [vmem:[%s165] sm:$0xff]
      %v172 = vld [vmem:[%s165 + $0x8] sm:$0xff]
      %v173 = vld [vmem:[%s165 + $0x10] sm:$0x1]
      %v174 = vld [vmem:[%s165 + $0x18] sm:$0x1]
      %v175 = vld [vmem:[%s165 + $0x20] sm:$0xff]
      %v176 = vld [vmem:[%s165 + $0x28] sm:$0xff]
      %v177 = vld [vmem:[%s165 + $0x30] sm:$0x1]
      %v178 = vld [vmem:[%s165 + $0x38] sm:$0x1]
      %v179 = vld [vmem:[%s165 + $0x40] sm:$0xff]
      %v180 = vld [vmem:[%s165 + $0x48] sm:$0xff]
      %v181 = vld [vmem:[%s165 + $0x50] sm:$0x1]
      %v182 = vld [vmem:[%s165 + $0x58] sm:$0x1]
      %v183 = vxor.u32 %v171, 2147483648
      %v184 = vxor.u32 %v172, 2147483648
      %v185 = vxor.u32 %v173, 2147483648
      %v186 = vxor.u32 %v174, 2147483648
      %v187 = vxor.u32 %v175, 2147483648
      %v188 = vxor.u32 %v176, 2147483648
      %v189 = vxor.u32 %v177, 2147483648
      %v190 = vxor.u32 %v178, 2147483648
      %v191 = vxor.u32 %v179, 2147483648
      %v192 = vxor.u32 %v180, 2147483648
      %v193 = vxor.u32 %v181, 2147483648
      %v194 = vxor.u32 %v182, 2147483648
      %v195 = vmul.f32 %v183, 1.442695
      %v196 = vpow.pop %v195
      %v197 = vmul.f32 %v184, 1.442695
      %v198 = vpow.pop %v197
      %v199 = vmul.f32 %v185, 1.442695
      %v200 = vpow.pop %v199
      %v201 = vmul.f32 %v186, 1.442695
      %v202 = vpow.pop %v201
      %v203 = vmul.f32 %v187, 1.442695
      %v204 = vpow.pop %v203
      %v205 = vmul.f32 %v188, 1.442695
      %v206 = vpow.pop %v205
      %v207 = vmul.f32 %v189, 1.442695
      %v208 = vpow.pop %v207
      %v209 = vmul.f32 %v190, 1.442695
      %v210 = vpow.pop %v209
      %v211 = vmul.f32 %v191, 1.442695
      %v212 = vpow.pop %v211
      %v213 = vmul.f32 %v192, 1.442695
      %v214 = vpow.pop %v213
      %v215 = vmul.f32 %v193, 1.442695
      %v216 = vpow.pop %v215
      %v217 = vmul.f32 %v194, 1.442695
      %v218 = vpow.pop %v217
      %v219 = vadd.f32 %v196, 1.0
      %v220 = vadd.f32 %v198, 1.0
      %v221 = vadd.f32 %v200, 1.0
      %v222 = vadd.f32 %v202, 1.0
      %v223 = vadd.f32 %v204, 1.0
      %v224 = vadd.f32 %v206, 1.0
      %v225 = vadd.f32 %v208, 1.0
      %v226 = vadd.f32 %v210, 1.0
      %v227 = vadd.f32 %v212, 1.0
      %v228 = vadd.f32 %v214, 1.0
      %v229 = vadd.f32 %v216, 1.0
      %v230 = vadd.f32 %v218, 1.0
      %v231 = vrcp.pop %v219
      %v232 = vmul.f32 1.0, %v231
      %v233 = vrcp.pop %v220
      %v234 = vmul.f32 1.0, %v233
      %v235 = vrcp.pop %v221
      %v236 = vmul.f32 1.0, %v235
      %v237 = vrcp.pop %v222
      %v238 = vmul.f32 1.0, %v237
      %v239 = vrcp.pop %v223
      %v240 = vmul.f32 1.0, %v239
      %v241 = vrcp.pop %v224
      %v242 = vmul.f32 1.0, %v241
      %v243 = vrcp.pop %v225
      %v244 = vmul.f32 1.0, %v243
      %v245 = vrcp.pop %v226
      %v246 = vmul.f32 1.0, %v245
      %v247 = vrcp.pop %v227
      %v248 = vmul.f32 1.0, %v247
      %v249 = vrcp.pop %v228
      %v250 = vmul.f32 1.0, %v249
      %v251 = vrcp.pop %v229
      %v252 = vmul.f32 1.0, %v251
      %v253 = vrcp.pop %v230
      %v254 = vmul.f32 1.0, %v253
      %v255 = vmul.f32 %v171, 1.442695
      %v256 = vpow.pop %v255
      %v257 = vmul.f32 %v172, 1.442695
      %v258 = vpow.pop %v257
      %v259 = vmul.f32 %v173, 1.442695
      %v260 = vpow.pop %v259
      %v261 = vmul.f32 %v174, 1.442695
      %v262 = vpow.pop %v261
      %v263 = vmul.f32 %v175, 1.442695
      %v264 = vpow.pop %v263
      %v265 = vmul.f32 %v176, 1.442695
      %v266 = vpow.pop %v265
      %v267 = vmul.f32 %v177, 1.442695
      %v268 = vpow.pop %v267
      %v269 = vmul.f32 %v178, 1.442695
      %v270 = vpow.pop %v269
      %v271 = vmul.f32 %v179, 1.442695
      %v272 = vpow.pop %v271
      %v273 = vmul.f32 %v180, 1.442695
      %v274 = vpow.pop %v273
      %v275 = vmul.f32 %v181, 1.442695
      %v276 = vpow.pop %v275
      %v277 = vmul.f32 %v182, 1.442695
      %v278 = vpow.pop %v277
      %v279 = vlaneseq
      %v280 = vshrl.u32 %v279, 7
      %v281 = vadd.s32 %v280, 8
      %vm282 = vcmp.ge.s32.totalorder %v280, 2
      %vm283 = vcmp.ge.s32.totalorder %v281, 2
      %vm284 = vcmp.lt.s32.totalorder %v280, 4
      %vm285 = vcmp.lt.s32.totalorder %v281, 4
      %vm286 = vmand %vm282, %vm284
      %vm287 = vmand %vm283, %vm285
      %v288 = vsel %vm286, 1, 0
      %v289 = vsel %vm287, 1, 0
      %vm290 = vcmp.eq.s32.totalorder %v288, 1
      %vm291 = vcmp.eq.s32.totalorder %v289, 1
      %v292 = vsel %vm290, %v256, %v232
      %v293 = vsel %vm290, %v258, %v234
      %v294 = vsel %vm291, %v260, %v236
      %v295 = vsel %vm291, %v262, %v238
      %v296 = vsel %vm290, %v264, %v240
      %v297 = vsel %vm290, %v266, %v242
      %v298 = vsel %vm291, %v268, %v244
      %v299 = vsel %vm291, %v270, %v246
      %v300 = vsel %vm290, %v272, %v248
      %v301 = vsel %vm290, %v274, %v250
      %v302 = vsel %vm291, %v276, %v252
      %v303 = vsel %vm291, %v278, %v254
      %v304 = vld [vmem:[%s1] sm:$0xff]
      %v305 = vld [vmem:[%s1 + $0x8] sm:$0xff]
      %v306 = vld [vmem:[%s1 + $0x10] sm:$0x1]
      %v307 = vld [vmem:[%s1 + $0x18] sm:$0x1]
      %v308 = vld [vmem:[%s1 + $0x20] sm:$0xff]
      %v309 = vld [vmem:[%s1 + $0x28] sm:$0xff]
      %v310 = vld [vmem:[%s1 + $0x30] sm:$0x1]
      %v311 = vld [vmem:[%s1 + $0x38] sm:$0x1]
      %v312 = vld [vmem:[%s1 + $0x40] sm:$0xff]
      %v313 = vld [vmem:[%s1 + $0x48] sm:$0xff]
      %v314 = vld [vmem:[%s1 + $0x50] sm:$0x1]
      %v315 = vld [vmem:[%s1 + $0x58] sm:$0x1]
      %v316 = vmul.f32 %v292, %v304
      %v317 = vmul.f32 %v293, %v305
      %v318 = vmul.f32 %v294, %v306
      %v319 = vmul.f32 %v295, %v307
      %v320 = vmul.f32 %v296, %v308
      %v321 = vmul.f32 %v297, %v309
      %v322 = vmul.f32 %v298, %v310
      %v323 = vmul.f32 %v299, %v311
      %v324 = vmul.f32 %v300, %v312
      %v325 = vmul.f32 %v301, %v313
      %v326 = vmul.f32 %v302, %v314
      %v327 = vmul.f32 %v303, %v315
      %v328 = vld [vmem:[%s2] sm:$0xff]
      %v329 = vld [vmem:[%s2 + $0x8] sm:$0xff]
      %v330 = vld [vmem:[%s2 + $0x10] sm:$0x1]
      %v331 = vld [vmem:[%s2 + $0x18] sm:$0x1]
      %v332 = vld [vmem:[%s2 + $0x20] sm:$0xff]
      %v333 = vld [vmem:[%s2 + $0x28] sm:$0xff]
      %v334 = vld [vmem:[%s2 + $0x30] sm:$0x1]
      %v335 = vld [vmem:[%s2 + $0x38] sm:$0x1]
      %v336 = vld [vmem:[%s2 + $0x40] sm:$0xff]
      %v337 = vld [vmem:[%s2 + $0x48] sm:$0xff]
      %v338 = vld [vmem:[%s2 + $0x50] sm:$0x1]
      %v339 = vld [vmem:[%s2 + $0x58] sm:$0x1]
      %v340 = vadd.f32 %v316, %v328
      %v341 = vadd.f32 %v317, %v329
      %v342 = vadd.f32 %v318, %v330
      %v343 = vadd.f32 %v319, %v331
      %v344 = vadd.f32 %v320, %v332
      %v345 = vadd.f32 %v321, %v333
      %v346 = vadd.f32 %v322, %v334
      %v347 = vadd.f32 %v323, %v335
      %v348 = vadd.f32 %v324, %v336
      %v349 = vadd.f32 %v325, %v337
      %v350 = vadd.f32 %v326, %v338
      %v351 = vadd.f32 %v327, %v339
      %352 = vst [vmem:[%s170] sm:$0xff] %v340
      %353 = vst [vmem:[%s170 + $0x8] sm:$0xff] %v341
      %354 = vst [vmem:[%s170 + $0x10] sm:$0x1] %v342
      %355 = vst [vmem:[%s170 + $0x18] sm:$0x1] %v343
      %356 = vst [vmem:[%s170 + $0x20] sm:$0xff] %v344
      %357 = vst [vmem:[%s170 + $0x28] sm:$0xff] %v345
      %358 = vst [vmem:[%s170 + $0x30] sm:$0x1] %v346
      %359 = vst [vmem:[%s170 + $0x38] sm:$0x1] %v347
      %360 = vst [vmem:[%s170 + $0x40] sm:$0xff] %v348
      %361 = vst [vmem:[%s170 + $0x48] sm:$0xff] %v349
      %362 = vst [vmem:[%s170 + $0x50] sm:$0x1] %v350
      %363 = vst [vmem:[%s170 + $0x58] sm:$0x1] %v351
      %p364 = scmp.lt.s32.totalorder %s14, 1
      %s365 = scalar_select %p364, %s14, 1
      %s366 = smul.addr %s365, 12
      %s367 = smul.addr %s366, 8
      %s368 = scalar_lea.vmem %s3, %s367
      // Predicated region
      $region33: #{tpu_custom_call.1} parent=31 // pred_check
        %p369 = pneg %p100
      $region34: #{tpu_custom_call.1} parent=31 // pred_check_branch
        %371 = sbr.rel (%p369) target = $region36
      $region35: #{tpu_custom_call.1} parent=31 // pred_region
        _
      $region36: #{tpu_custom_call.1} parent=31 // pred_fallthru
        _
    $region32: #{tpu_custom_call.1} parent=5 // pred_fallthru
      _
    %p372 = scmp.le.s32.totalorder 2, %s9
    // Predicated region
    $region37: #{tpu_custom_call.1} parent=5 // pred_check
      %p373 = pneg %p372
    $region38: #{tpu_custom_call.1} parent=5 // pred_check_branch
      %375 = sbr.rel (%p373) target = $region40
    $region39: #{tpu_custom_call.1} parent=5 // pred_region
      %s376 = ssub.s32 %s9, 2
      // Predicated region
      $region41: #{tpu_custom_call.1} parent=39 // pred_check
        %p377 = pneg %p106
      $region42: #{tpu_custom_call.1} parent=39 // pred_check_branch
        %379 = sbr.rel (%p377) target = $region44
      $region43: #{tpu_custom_call.1} parent=39 // pred_region
        %p380 = scmp.lt.s32.totalorder %s15, 1
        %s381 = scalar_select %p380, %s15, 1
        %s382 = smul.addr %s381, 12
        %s383 = smul.addr %s382, 8
        %s384 = scalar_lea.vmem %s3, %s383
      $region44: #{tpu_custom_call.1} parent=39 // pred_fallthru
        _
    $region40: #{tpu_custom_call.1} parent=5 // pred_fallthru
      _
  $region6: #{tpu_custom_call.1} parent=0 // loop_footer
    %s13 = sadd.s32 1, %s9
  $region7: #{tpu_custom_call.1} parent=0 // loop_footer_branch
    %8 = sbr.rel target = $region3
  $region8: #{tpu_custom_call.1} parent=0 // loop_exit
    _

</llo_original>
